<compile_context>
chip_gen: v5e
topology: v5e:2x2
jax: 0.10.0
libtpu: 0.0.40
codegen_flags: <defaults>
</compile_context>

<pallas_src>
import functools

import jax
import jax.numpy as jnp
from jax.experimental import pallas as pl
from jax.experimental.pallas import tpu as pltpu


def _round_up(n, m):
    return ((n + m - 1) // m) * m


def _softplus(x, beta, inv_beta):
    # PyTorch Softplus: 1/beta * log(1 + exp(beta*x)); linear when beta*x > 20.
    bx = x * beta
    sp = jnp.log1p(jnp.exp(jnp.minimum(bx, 20.0))) * inv_beta
    return jnp.where(bx > 20.0, x, sp)


def _sigmoid(z):
    return 1.0 / (1.0 + jnp.exp(-z))


def _encoder_kernel(xt_ref, w1t_ref, b1_ref, w2t_ref, b2_ref, w3_ref, b3_ref,
                    o_ref, *, beta1, inv_beta1, beta2, inv_beta2):
    # Batch lives on the lane (minor) axis everywhere.
    xt = xt_ref[...]                                              # (I, bm)
    h1 = jnp.dot(w1t_ref[...], xt,
                 preferred_element_type=jnp.float32) + b1_ref[...]  # (H, bm)
    h1 = _softplus(h1, beta1, inv_beta1)
    h2 = jnp.dot(w2t_ref[...], h1.astype(w2t_ref.dtype),
                 preferred_element_type=jnp.float32) + b2_ref[...]  # (M, bm)
    h2 = _softplus(h2, beta2, inv_beta2)
    # Final M->1 projection: VPU multiply + cross-sublane sum (avoids a
    # near-empty N=1 MXU pass); result is naturally lane-major.
    z = jnp.sum(h2 * w3_ref[...], axis=0, keepdims=True) + b3_ref[...]  # (1, bm)
    o_ref[...] = _sigmoid(z).astype(o_ref.dtype)


def encoder_forward(x, params, *, block_m=None, use_bf16_inputs=False):
    """x: (B, input_size) float32. params: dict of w1,b1,w2,b2,w3,b3 (in,out layout)."""
    w1, b1, w2, b2, w3, b3 = (params[k] for k in
                              ("w1", "b1", "w2", "b2", "w3", "b3"))
    B, I = x.shape
    H = w1.shape[1]
    M = w2.shape[1]
    beta1 = float(H)   # nn.Softplus(hidden_size)      -> beta = hidden_size
    beta2 = float(M)   # nn.Softplus(more_hidden_size) -> beta = more_hidden_size

    # Batch tiling: whole batch in one lane-aligned block when it fits; only
    # very large batches use a multi-step (megacore-parallel) grid.
    if block_m is None:
        block_m = min(_round_up(B, 128), 2048)
    else:
        block_m = _round_up(max(block_m, 128), 128)
    B_pad = _round_up(B, block_m)
    grid = (B_pad // block_m,)

    if B_pad != B:
        x = jnp.pad(x, ((0, B_pad - B), (0, 0)))  # zero rows: finite, sliced off

    # Wrapper-side layout plumbing: batch goes on the lane axis.
    xt = x.T                       # (I, B_pad)
    w1t = w1.T                     # (H, I)
    w2t = w2.T                     # (M, H)
    b1c = b1.reshape(H, 1)
    b2c = b2.reshape(M, 1)
    w3c = w3.reshape(M, 1)
    b3c = b3.reshape(1, 1)

    if use_bf16_inputs:
        # MXU inputs only; softplus/sigmoid and accumulation stay f32.
        xt = xt.astype(jnp.bfloat16)
        w1t = w1t.astype(jnp.bfloat16)
        w2t = w2t.astype(jnp.bfloat16)

    kernel = functools.partial(_encoder_kernel,
                               beta1=beta1, inv_beta1=1.0 / beta1,
                               beta2=beta2, inv_beta2=1.0 / beta2)

    out = pl.pallas_call(
        kernel,
        out_shape=jax.ShapeDtypeStruct((1, B_pad), jnp.float32),
        grid_spec=pltpu.PrefetchScalarGridSpec(
            num_scalar_prefetch=0,
            grid=grid,
            in_specs=[
                pl.BlockSpec((I, block_m), lambda i: (0, i)),   # x^T batch tile
                pl.BlockSpec((H, I), lambda i: (0, 0)),          # w1^T (full)
                pl.BlockSpec((H, 1), lambda i: (0, 0)),          # b1 column
                pl.BlockSpec((M, H), lambda i: (0, 0)),          # w2^T (full)
                pl.BlockSpec((M, 1), lambda i: (0, 0)),          # b2 column
                pl.BlockSpec((M, 1), lambda i: (0, 0)),          # w3 column
                pl.BlockSpec((1, 1), lambda i: (0, 0)),          # b3
            ],
            out_specs=pl.BlockSpec((1, block_m), lambda i: (0, i)),  # lane-dense
        ),
        compiler_params=pltpu.CompilerParams(
            dimension_semantics=("parallel",)),
    )(xt, w1t, b1c, w2t, b2c, w3c, b3c)

    return out[0, :B].reshape(B, 1)


def init_params(key, input_size, hidden_size, more_hidden_size):
    """Deterministic synthetic parameters (shapes match the torch module)."""
    k1, k2, k3, k4, k5, k6 = jax.random.split(key, 6)
    lim1 = 1.0 / jnp.sqrt(jnp.float32(input_size))
    lim2 = 1.0 / jnp.sqrt(jnp.float32(hidden_size))
    lim3 = 1.0 / jnp.sqrt(jnp.float32(more_hidden_size))
    w1 = jax.random.uniform(k1, (input_size, hidden_size), jnp.float32, -lim1, lim1)
    b1 = jax.random.uniform(k2, (1, hidden_size), jnp.float32, -lim1, lim1)
    w2 = jax.random.uniform(k3, (hidden_size, more_hidden_size), jnp.float32, -lim2, lim2)
    b2 = jax.random.uniform(k4, (1, more_hidden_size), jnp.float32, -lim2, lim2)
    # fcnew: xavier_normal_ -> std = sqrt(2/(fan_in+fan_out))
    std3 = jnp.sqrt(2.0 / jnp.float32(more_hidden_size + 1))
    w3 = jax.random.normal(k5, (more_hidden_size, 1), jnp.float32) * std3
    b3 = jax.random.uniform(k6, (1, 1), jnp.float32, -lim3, lim3)
    return dict(w1=w1, b1=b1, w2=w2, b2=b2, w3=w3, b3=b3)


def reference_forward(x, params):
    beta1 = float(params["w1"].shape[1])
    beta2 = float(params["w2"].shape[1])
    h1 = _softplus(x @ params["w1"] + params["b1"], beta1, 1.0 / beta1)
    h2 = _softplus(h1 @ params["w2"] + params["b2"], beta2, 1.0 / beta2)
    z = h2 @ params["w3"] + params["b3"]
    return _sigmoid(z)


if __name__ == "__main__":
    key = jax.random.PRNGKey(0)
    kx, kx2, kp = jax.random.split(key, 3)

    input_size, hidden_size, more_hidden_size = 16, 32, 32
    params = init_params(kp, input_size, hidden_size, more_hidden_size)

    # Small batch: whole batch in one lane-aligned block (grid=(1,)).
    B = 16
    x = jax.random.normal(kx, (B, input_size), jnp.float32)
    out = jax.block_until_ready(encoder_forward(x, params))
    ref = reference_forward(x, params)
    assert out.shape == (B, 1)
    assert jnp.allclose(out, ref, atol=1e-5, rtol=1e-5)

    # Larger, non-multiple batch: exercises padding + multi-block parallel grid.
    B2 = 2500
    x2 = jax.random.normal(kx2, (B2, input_size), jnp.float32)
    out2 = jax.block_until_ready(encoder_forward(x2, params, block_m=1024))
    ref2 = reference_forward(x2, params)
    assert out2.shape == (B2, 1)
    assert jnp.allclose(out2, ref2, atol=1e-4, rtol=1e-4)

    # bf16 matmul inputs (recommended for v6e/v7x): looser tolerance.
    out3 = jax.block_until_ready(encoder_forward(x, params, use_bf16_inputs=True))
    assert jnp.allclose(out3, ref, atol=5e-2, rtol=5e-2)

    print("KERNEL_OK")
</pallas_src>

<mosaic_0001>
module attributes {stable_mosaic.version = 11 : i64} {
  func.func @_encoder_kernel(%arg0: i32, %arg1: memref<16x128xf32, #tpu.memory_space<vmem>>, %arg2: memref<32x16xf32, #tpu.memory_space<vmem>>, %arg3: memref<32x1xf32, #tpu.memory_space<vmem>>, %arg4: memref<32x32xf32, #tpu.memory_space<vmem>>, %arg5: memref<32x1xf32, #tpu.memory_space<vmem>>, %arg6: memref<32x1xf32, #tpu.memory_space<vmem>>, %arg7: memref<1x1xf32, #tpu.memory_space<vmem>>, %arg8: memref<1x128xf32, #tpu.memory_space<vmem>>) attributes {dimension_semantics = [#tpu.dimension_semantics<parallel>], iteration_bounds = array<i64: 1>, scalar_prefetch = 0 : i64, scratch_operands = 0 : i64, tpu.core_type = #tpu.core_type<tc>, window_params = [{transform_indices = @transform_0, window_bounds = array<i64: 16, 128>}, {pipeline_mode = #tpu.pipeline_mode<synchronous>, transform_indices = @transform_1, window_bounds = array<i64: 32, 16>}, {pipeline_mode = #tpu.pipeline_mode<synchronous>, transform_indices = @transform_2, window_bounds = array<i64: 32, 1>}, {pipeline_mode = #tpu.pipeline_mode<synchronous>, transform_indices = @transform_3, window_bounds = array<i64: 32, 32>}, {pipeline_mode = #tpu.pipeline_mode<synchronous>, transform_indices = @transform_4, window_bounds = array<i64: 32, 1>}, {pipeline_mode = #tpu.pipeline_mode<synchronous>, transform_indices = @transform_5, window_bounds = array<i64: 32, 1>}, {pipeline_mode = #tpu.pipeline_mode<synchronous>, transform_indices = @transform_6, window_bounds = array<i64: 1, 1>}, {transform_indices = @transform_7, window_bounds = array<i64: 1, 128>}]} {
    %c0 = arith.constant 0 : index
    %c0_0 = arith.constant 0 : index
    %0 = vector.load %arg1[%c0, %c0_0] : memref<16x128xf32, #tpu.memory_space<vmem>>, vector<16x128xf32>
    %c0_1 = arith.constant 0 : index
    %c0_2 = arith.constant 0 : index
    %1 = vector.load %arg2[%c0_1, %c0_2] : memref<32x16xf32, #tpu.memory_space<vmem>>, vector<32x16xf32>
    %cst = arith.constant dense<0.000000e+00> : vector<32x128xf32>
    %2 = tpu.matmul %1, %0, %cst {dimension_numbers = #tpu.dot_dimension_numbers<[1], [0], [0], [1], [0, 0, 1, 1], [], []>} : vector<32x16xf32>, vector<16x128xf32>, vector<32x128xf32> -> vector<32x128xf32>
    %c0_3 = arith.constant 0 : index
    %c0_4 = arith.constant 0 : index
    %3 = vector.load %arg3[%c0_3, %c0_4] : memref<32x1xf32, #tpu.memory_space<vmem>>, vector<32x1xf32>
    %4 = vector.broadcast %3 : vector<32x1xf32> to vector<32x128xf32>
    %5 = arith.addf %2, %4 : vector<32x128xf32>
    %cst_5 = arith.constant 3.200000e+01 : f32
    %6 = vector.broadcast %cst_5 : f32 to vector<32x128xf32>
    %7 = arith.mulf %5, %6 : vector<32x128xf32>
    %cst_6 = arith.constant 2.000000e+01 : f32
    %8 = vector.broadcast %cst_6 : f32 to vector<32x128xf32>
    %9 = arith.minimumf %7, %8 : vector<32x128xf32>
    %10 = math.exp %9 : vector<32x128xf32>
    %11 = math.log1p %10 : vector<32x128xf32>
    %cst_7 = arith.constant 3.125000e-02 : f32
    %12 = vector.broadcast %cst_7 : f32 to vector<32x128xf32>
    %13 = arith.mulf %11, %12 : vector<32x128xf32>
    %cst_8 = arith.constant 2.000000e+01 : f32
    %14 = vector.broadcast %cst_8 : f32 to vector<32x128xf32>
    %15 = arith.cmpf ogt, %7, %14 : vector<32x128xf32>
    %16 = arith.select %15, %5, %13 : vector<32x128xi1>, vector<32x128xf32>
    %c0_9 = arith.constant 0 : index
    %c0_10 = arith.constant 0 : index
    %17 = vector.load %arg4[%c0_9, %c0_10] : memref<32x32xf32, #tpu.memory_space<vmem>>, vector<32x32xf32>
    %cst_11 = arith.constant dense<0.000000e+00> : vector<32x128xf32>
    %18 = tpu.matmul %17, %16, %cst_11 {dimension_numbers = #tpu.dot_dimension_numbers<[1], [0], [0], [1], [0, 0, 1, 1], [], []>} : vector<32x32xf32>, vector<32x128xf32>, vector<32x128xf32> -> vector<32x128xf32>
    %c0_12 = arith.constant 0 : index
    %c0_13 = arith.constant 0 : index
    %19 = vector.load %arg5[%c0_12, %c0_13] : memref<32x1xf32, #tpu.memory_space<vmem>>, vector<32x1xf32>
    %20 = vector.broadcast %19 : vector<32x1xf32> to vector<32x128xf32>
    %21 = arith.addf %18, %20 : vector<32x128xf32>
    %cst_14 = arith.constant 3.200000e+01 : f32
    %22 = vector.broadcast %cst_14 : f32 to vector<32x128xf32>
    %23 = arith.mulf %21, %22 : vector<32x128xf32>
    %cst_15 = arith.constant 2.000000e+01 : f32
    %24 = vector.broadcast %cst_15 : f32 to vector<32x128xf32>
    %25 = arith.minimumf %23, %24 : vector<32x128xf32>
    %26 = math.exp %25 : vector<32x128xf32>
    %27 = math.log1p %26 : vector<32x128xf32>
    %cst_16 = arith.constant 3.125000e-02 : f32
    %28 = vector.broadcast %cst_16 : f32 to vector<32x128xf32>
    %29 = arith.mulf %27, %28 : vector<32x128xf32>
    %cst_17 = arith.constant 2.000000e+01 : f32
    %30 = vector.broadcast %cst_17 : f32 to vector<32x128xf32>
    %31 = arith.cmpf ogt, %23, %30 : vector<32x128xf32>
    %32 = arith.select %31, %21, %29 : vector<32x128xi1>, vector<32x128xf32>
    %c0_18 = arith.constant 0 : index
    %c0_19 = arith.constant 0 : index
    %33 = vector.load %arg6[%c0_18, %c0_19] : memref<32x1xf32, #tpu.memory_space<vmem>>, vector<32x1xf32>
    %34 = vector.broadcast %33 : vector<32x1xf32> to vector<32x128xf32>
    %35 = arith.mulf %32, %34 : vector<32x128xf32>
    %cst_20 = arith.constant dense<0.000000e+00> : vector<128xf32>
    %36 = vector.multi_reduction <add>, %35, %cst_20 [0] : vector<32x128xf32> to vector<128xf32>
    %37 = vector.shape_cast %36 : vector<128xf32> to vector<1x128xf32>
    %c0_21 = arith.constant 0 : index
    %c0_22 = arith.constant 0 : index
    %38 = vector.load %arg7[%c0_21, %c0_22] : memref<1x1xf32, #tpu.memory_space<vmem>>, vector<1x1xf32>
    %39 = vector.broadcast %38 : vector<1x1xf32> to vector<1x128xf32>
    %40 = arith.addf %37, %39 : vector<1x128xf32>
    %cst_23 = arith.constant 0.000000e+00 : f32
    %41 = vector.broadcast %cst_23 : f32 to vector<1x128xf32>
    %42 = arith.subf %41, %40 : vector<1x128xf32>
    %43 = math.exp %42 : vector<1x128xf32>
    %cst_24 = arith.constant 1.000000e+00 : f32
    %44 = vector.broadcast %cst_24 : f32 to vector<1x128xf32>
    %45 = arith.addf %44, %43 : vector<1x128xf32>
    %cst_25 = arith.constant 1.000000e+00 : f32
    %46 = vector.broadcast %cst_25 : f32 to vector<1x128xf32>
    %47 = arith.divf %46, %45 : vector<1x128xf32>
    %c0_26 = arith.constant 0 : index
    %c0_27 = arith.constant 0 : index
    %48 = vector.load %arg8[%c0_26, %c0_27] : memref<1x128xf32, #tpu.memory_space<vmem>>, vector<1x128xf32>
    tpu.vector_store %arg8[%c0_26, %c0_27], %47 {strides = array<i32>} : memref<1x128xf32, #tpu.memory_space<vmem>>, vector<1x128xf32>,
    return
  }
  func.func @transform_0(%arg0: i32) -> (i32, i32) {
    %c0_i32 = arith.constant 0 : i32
    %c0_i32_0 = arith.constant 0 : i32
    return %c0_i32, %arg0 : i32, i32
  }
  func.func @transform_1(%arg0: i32) -> (i32, i32) {
    %c0_i32 = arith.constant 0 : i32
    %c0_i32_0 = arith.constant 0 : i32
    %c0_i32_1 = arith.constant 0 : i32
    return %c0_i32, %c0_i32_0 : i32, i32
  }
  func.func @transform_2(%arg0: i32) -> (i32, i32) {
    %c0_i32 = arith.constant 0 : i32
    %c0_i32_0 = arith.constant 0 : i32
    %c0_i32_1 = arith.constant 0 : i32
    return %c0_i32, %c0_i32_0 : i32, i32
  }
  func.func @transform_3(%arg0: i32) -> (i32, i32) {
    %c0_i32 = arith.constant 0 : i32
    %c0_i32_0 = arith.constant 0 : i32
    %c0_i32_1 = arith.constant 0 : i32
    return %c0_i32, %c0_i32_0 : i32, i32
  }
  func.func @transform_4(%arg0: i32) -> (i32, i32) {
    %c0_i32 = arith.constant 0 : i32
    %c0_i32_0 = arith.constant 0 : i32
    %c0_i32_1 = arith.constant 0 : i32
    return %c0_i32, %c0_i32_0 : i32, i32
  }
  func.func @transform_5(%arg0: i32) -> (i32, i32) {
    %c0_i32 = arith.constant 0 : i32
    %c0_i32_0 = arith.constant 0 : i32
    %c0_i32_1 = arith.constant 0 : i32
    return %c0_i32, %c0_i32_0 : i32, i32
  }
  func.func @transform_6(%arg0: i32) -> (i32, i32) {
    %c0_i32 = arith.constant 0 : i32
    %c0_i32_0 = arith.constant 0 : i32
    %c0_i32_1 = arith.constant 0 : i32
    return %c0_i32, %c0_i32_0 : i32, i32
  }
  func.func @transform_7(%arg0: i32) -> (i32, i32) {
    %c0_i32 = arith.constant 0 : i32
    %c0_i32_0 = arith.constant 0 : i32
    return %c0_i32, %arg0 : i32, i32
  }
}

</mosaic_0001>

<llo_original>
// kernel: tpu_custom_call.1
$region0: #{tpu_custom_call.1}
  #allocation0 [shape = 'u32[]', space=smem, size = 0x4, offset = 0x4, fixed_abs, tag = 'smem constant byte address 0x4 - core index']
  #allocation1 [shape = 'u32[72,128]{1,0:T(1,128)}', space=vmem, size = 0x9000, scoped, tag = 'internal scratch']
  #allocation2 [shape = 'f32[1,1]{1,0:T(1,128)S(1)}', space=vmem, size = 0x200, scoped, tag = 'scoped memory for tpu_custom_call.1']
  %s0 = inlined_call_operand.vmem [shape: f32[16,128], index: 0, kind: input, shape index: {}]
  %s1 = inlined_call_operand.vmem [shape: f32[32,16], index: 1, kind: input, shape index: {}]
  %s2 = inlined_call_operand.vmem [shape: f32[32,1], index: 2, kind: input, shape index: {}]
  %s3 = inlined_call_operand.vmem [shape: f32[32,32], index: 3, kind: input, shape index: {}]
  %s4 = inlined_call_operand.vmem [shape: f32[32,1], index: 4, kind: input, shape index: {}]
  %s5 = inlined_call_operand.vmem [shape: f32[32,1], index: 5, kind: input, shape index: {}]
  %s6 = inlined_call_operand.<no memory space> [shape: f32[1,1], index: 6, kind: input, shape index: {}]
  %s7 = inlined_call_operand.hbm [shape: f32[1,128], index: 7, kind: output, shape index: {}]
  %s8 = sld [smem:[#allocation0]]
  $region38: #{tpu_custom_call.1} parent=0
    _
  %s10 = ssub.s32 1, %s8
  %s11 = scalar_select 0, %s10, %s8
  %v12 = vstv %s6
  %13 = vst [vmem:[#allocation2] sm:$0x1] %v12
  $region1: #{tpu_custom_call.1} parent=0
    #allocation3 [shape = 'u8[512]{0}', space=vmem, size = 0x400, scoped, tag = 'output window, operand 0, single buffered']
    #allocation4 [shape = 's32[1]{0}', space=sflag, size = 0x4, scoped, tag = 'scoped memory for tpu_custom_call.1']
    %14 = vsyncpa [#allocation4], 0
    // Predicated region
    $region2: #{tpu_custom_call.1} parent=1 // pred_check
      _
    $region3: #{tpu_custom_call.1} parent=1 // pred_check_branch
      %16 = sbr.rel (0) target = $region5
    $region4: #{tpu_custom_call.1} parent=1 // pred_region
      _
    $region5: #{tpu_custom_call.1} parent=1 // pred_fallthru
      _
    // Predicated region
    $region6: #{tpu_custom_call.1} parent=1 // pred_check
      _
    $region7: #{tpu_custom_call.1} parent=1 // pred_check_branch
      %18 = sbr.rel (0) target = $region9
    $region8: #{tpu_custom_call.1} parent=1 // pred_region
      _
    $region9: #{tpu_custom_call.1} parent=1 // pred_fallthru
      _
    // Predicated region
    $region10: #{tpu_custom_call.1} parent=1 // pred_check
      _
    $region11: #{tpu_custom_call.1} parent=1 // pred_check_branch
      %20 = sbr.rel (0) target = $region13
    $region12: #{tpu_custom_call.1} parent=1 // pred_region
      _
    $region13: #{tpu_custom_call.1} parent=1 // pred_fallthru
      _
    // Predicated region
    $region14: #{tpu_custom_call.1} parent=1 // pred_check
      _
    $region15: #{tpu_custom_call.1} parent=1 // pred_check_branch
      %22 = sbr.rel (0) target = $region17
    $region16: #{tpu_custom_call.1} parent=1 // pred_region
      _
    $region17: #{tpu_custom_call.1} parent=1 // pred_fallthru
      _
    // Predicated region
    $region18: #{tpu_custom_call.1} parent=1 // pred_check
      _
    $region19: #{tpu_custom_call.1} parent=1 // pred_check_branch
      %24 = sbr.rel (0) target = $region21
    $region20: #{tpu_custom_call.1} parent=1 // pred_region
      _
    $region21: #{tpu_custom_call.1} parent=1 // pred_fallthru
      _
    // Predicated region
    $region22: #{tpu_custom_call.1} parent=1 // pred_check
      _
    $region23: #{tpu_custom_call.1} parent=1 // pred_check_branch
      %26 = sbr.rel (0) target = $region25
    $region24: #{tpu_custom_call.1} parent=1 // pred_region
      _
    $region25: #{tpu_custom_call.1} parent=1 // pred_fallthru
      _
    // Predicated region
    $region26: #{tpu_custom_call.1} parent=1 // pred_check
      _
    $region27: #{tpu_custom_call.1} parent=1 // pred_check_branch
      %28 = sbr.rel (0) target = $region29
    $region28: #{tpu_custom_call.1} parent=1 // pred_region
      _
    $region29: #{tpu_custom_call.1} parent=1 // pred_fallthru
      _
    %v29 = vld [vmem:[%s0] sm:$0xff]
    %v30 = vld [vmem:[%s0 + $0x8] sm:$0xff]
    %v31 = vld [vmem:[%s1] sm:$0xff]
    %v32 = vld [vmem:[%s1 + $0x8] sm:$0xff]
    %v33 = vld [vmem:[%s1 + $0x10] sm:$0xff]
    %v34 = vld [vmem:[%s1 + $0x18] sm:$0xff]
    %v35 = vld [vmem:[%s2] sm:$0xff]
    %v36 = vld [vmem:[%s2 + $0x8] sm:$0xff]
    %v37 = vld [vmem:[%s2 + $0x10] sm:$0xff]
    %v38 = vld [vmem:[%s2 + $0x18] sm:$0xff]
    %40 = vset.pattern.permute.xlu0 0
    %41 = vperm.xlu0 %40, %v35
    %v42 = vpop.permute.xlu0 %41
    %45 = vset.pattern.permute.xlu0 0
    %46 = vperm.xlu0 %45, %v36
    %v47 = vpop.permute.xlu0 %46
    %50 = vset.pattern.permute.xlu0 0
    %51 = vperm.xlu0 %50, %v37
    %v52 = vpop.permute.xlu0 %51
    %55 = vset.pattern.permute.xlu0 0
    %56 = vperm.xlu0 %55, %v38
    %v57 = vpop.permute.xlu0 %56
    %vm59 = vcmask 130048
    %v61 = vsel %vm59, %v31, 0
    %v64 = vsel %vm59, %v32, 0
    %v67 = vsel %vm59, %v33, 0
    %v70 = vsel %vm59, %v34, 0
    %72 = vmatpush.msra.mxu0 0.0
    %73 = vmatpush.msra.mxu0 0.0
    %74 = vmatpush.msra.mxu0 0.0
    %75 = vmatpush.msra.mxu0 0.0
    %76 = vmatpush.msra.mxu0 0.0
    %77 = vmatpush.msra.mxu0 0.0
    %78 = vmatpush.msra.mxu0 0.0
    %79 = vmatpush.msra.mxu0 0.0
    %80 = vmatpush.msra.mxu0 0.0
    %81 = vmatpush.msra.mxu0 0.0
    %82 = vmatpush.msra.mxu0 0.0
    %83 = vmatpush.msra.mxu0 0.0
    %84 = vmatpush.msra.mxu0 0.0
    %85 = vmatpush.msra.mxu0 0.0
    %86 = vmatpush.msra.mxu0 %v30
    %87 = vmatpush.msra.mxu0 %v29
    %88 = vmatmul.f32.gmra.mxu0 %v61
    %v89 = vpop.f32.mrf.mxu0
    %v90 = vadd.f32 %v42, %v89
    %91 = vmatmul.f32.gmra.mxu0 %v64
    %v92 = vpop.f32.mrf.mxu0
    %v93 = vadd.f32 %v47, %v92
    %94 = vmatmul.f32.gmra.mxu0 %v67
    %v95 = vpop.f32.mrf.mxu0
    %v96 = vadd.f32 %v52, %v95
    %97 = vmatmul.f32.gmra.mxu0 %v70
    %v98 = vpop.f32.mrf.mxu0
    %v99 = vadd.f32 %v57, %v98
    %100 = vdwg.mxu0
    %v101 = vmul.f32 %v90, 32.0
    %v102 = vmul.f32 %v93, 32.0
    %v103 = vmul.f32 %v96, 32.0
    %v104 = vmul.f32 %v99, 32.0
    %v105 = vmin.f32 %v101, 20.0
    %v106 = vmin.f32 %v102, 20.0
    %v107 = vmin.f32 %v103, 20.0
    %v108 = vmin.f32 %v104, 20.0
    %v109 = vmul.f32 %v105, 1.442695
    %v110 = vpow.pop %v109
    %v111 = vmul.f32 %v106, 1.442695
    %v112 = vpow.pop %v111
    %v113 = vmul.f32 %v107, 1.442695
    %v114 = vpow.pop %v113
    %v115 = vmul.f32 %v108, 1.442695
    %v116 = vpow.pop %v115
    %v117 = vadd.f32 %v110, 1.0
    %v118 = vlog2.pop %v117
    %v119 = vmul.f32 %v118, 0.6931472
    %v120 = vmul.f32 -0.5, %v110
    %v121 = vadd.f32 %v120, 1.0
    %v122 = vmul.f32 %v121, %v110
    %v123 = vand.u32 2147483647, %v110
    %vm124 = vcmp.lt.f32.partialorder %v123, 0.0004427343
    %v125 = vsel %vm124, %v122, %v119
    %v126 = vadd.f32 %v112, 1.0
    %v127 = vlog2.pop %v126
    %v128 = vmul.f32 %v127, 0.6931472
    %v129 = vmul.f32 -0.5, %v112
    %v130 = vadd.f32 %v129, 1.0
    %v131 = vmul.f32 %v130, %v112
    %v132 = vand.u32 2147483647, %v112
    %vm133 = vcmp.lt.f32.partialorder %v132, 0.0004427343
    %v134 = vsel %vm133, %v131, %v128
    %v135 = vadd.f32 %v114, 1.0
    %v136 = vlog2.pop %v135
    %v137 = vmul.f32 %v136, 0.6931472
    %v138 = vmul.f32 -0.5, %v114
    %v139 = vadd.f32 %v138, 1.0
    %v140 = vmul.f32 %v139, %v114
    %v141 = vand.u32 2147483647, %v114
    %vm142 = vcmp.lt.f32.partialorder %v141, 0.0004427343
    %v143 = vsel %vm142, %v140, %v137
    %v144 = vadd.f32 %v116, 1.0
    %v145 = vlog2.pop %v144
    %v146 = vmul.f32 %v145, 0.6931472
    %v147 = vmul.f32 -0.5, %v116
    %v148 = vadd.f32 %v147, 1.0
    %v149 = vmul.f32 %v148, %v116
    %v150 = vand.u32 2147483647, %v116
    %vm151 = vcmp.lt.f32.partialorder %v150, 0.0004427343
    %v152 = vsel %vm151, %v149, %v146
    %v153 = vmul.f32 %v125, 0.03125
    %v154 = vmul.f32 %v134, 0.03125
    %v155 = vmul.f32 %v143, 0.03125
    %v156 = vmul.f32 %v152, 0.03125
    %vm157 = vcmp.gt.f32.partialorder %v101, 20.0
    %vm158 = vcmp.gt.f32.partialorder %v102, 20.0
    %vm159 = vcmp.gt.f32.partialorder %v103, 20.0
    %vm160 = vcmp.gt.f32.partialorder %v104, 20.0
    %v161 = vsel %vm157, %v90, %v153
    %v162 = vsel %vm158, %v93, %v154
    %v163 = vsel %vm159, %v96, %v155
    %v164 = vsel %vm160, %v99, %v156
    %v165 = vld [vmem:[%s3] sm:$0xff]
    %v166 = vld [vmem:[%s3 + $0x8] sm:$0xff]
    %v167 = vld [vmem:[%s3 + $0x10] sm:$0xff]
    %v168 = vld [vmem:[%s3 + $0x18] sm:$0xff]
    %v169 = vld [vmem:[%s4] sm:$0xff]
    %v170 = vld [vmem:[%s4 + $0x8] sm:$0xff]
    %v171 = vld [vmem:[%s4 + $0x10] sm:$0xff]
    %v172 = vld [vmem:[%s4 + $0x18] sm:$0xff]
    %174 = vset.pattern.permute.xlu0 0
    %175 = vperm.xlu0 %174, %v169
    %v176 = vpop.permute.xlu0 %175
    %179 = vset.pattern.permute.xlu0 0
    %180 = vperm.xlu0 %179, %v170
    %v181 = vpop.permute.xlu0 %180
    %184 = vset.pattern.permute.xlu0 0
    %185 = vperm.xlu0 %184, %v171
    %v186 = vpop.permute.xlu0 %185
    %189 = vset.pattern.permute.xlu0 0
    %190 = vperm.xlu0 %189, %v172
    %v191 = vpop.permute.xlu0 %190
    %vm193 = vcmask 261120
    %v195 = vsel %vm193, %v165, 0
    %v198 = vsel %vm193, %v166, 0
    %v201 = vsel %vm193, %v167, 0
    %v204 = vsel %vm193, %v168, 0
    %206 = vmatpush.msra.mxu0 0.0
    %207 = vmatpush.msra.mxu0 0.0
    %208 = vmatpush.msra.mxu0 0.0
    %209 = vmatpush.msra.mxu0 0.0
    %210 = vmatpush.msra.mxu0 0.0
    %211 = vmatpush.msra.mxu0 0.0
    %212 = vmatpush.msra.mxu0 0.0
    %213 = vmatpush.msra.mxu0 0.0
    %214 = vmatpush.msra.mxu0 0.0
    %215 = vmatpush.msra.mxu0 0.0
    %216 = vmatpush.msra.mxu0 0.0
    %217 = vmatpush.msra.mxu0 0.0
    %218 = vmatpush.msra.mxu0 %v164
    %219 = vmatpush.msra.mxu0 %v163
    %220 = vmatpush.msra.mxu0 %v162
    %221 = vmatpush.msra.mxu0 %v161
    %222 = vmatmul.f32.gmra.mxu0 %v195
    %v223 = vpop.f32.mrf.mxu0
    %v224 = vadd.f32 %v176, %v223
    %225 = vmatmul.f32.gmra.mxu0 %v198
    %v226 = vpop.f32.mrf.mxu0
    %v227 = vadd.f32 %v181, %v226
    %228 = vmatmul.f32.gmra.mxu0 %v201
    %v229 = vpop.f32.mrf.mxu0
    %v230 = vadd.f32 %v186, %v229
    %231 = vmatmul.f32.gmra.mxu0 %v204
    %v232 = vpop.f32.mrf.mxu0
    %v233 = vadd.f32 %v191, %v232
    %234 = vdwg.mxu0
    %v235 = vmul.f32 %v224, 32.0
    %v236 = vmul.f32 %v227, 32.0
    %v237 = vmul.f32 %v230, 32.0
    %v238 = vmul.f32 %v233, 32.0
    %v239 = vmin.f32 %v235, 20.0
    %v240 = vmin.f32 %v236, 20.0
    %v241 = vmin.f32 %v237, 20.0
    %v242 = vmin.f32 %v238, 20.0
    %v243 = vmul.f32 %v239, 1.442695
    %v244 = vpow.pop %v243
    %v245 = vmul.f32 %v240, 1.442695
    %v246 = vpow.pop %v245
    %v247 = vmul.f32 %v241, 1.442695
    %v248 = vpow.pop %v247
    %v249 = vmul.f32 %v242, 1.442695
    %v250 = vpow.pop %v249
    %v251 = vadd.f32 %v244, 1.0
    %v252 = vlog2.pop %v251
    %v253 = vmul.f32 %v252, 0.6931472
    %v254 = vmul.f32 -0.5, %v244
    %v255 = vadd.f32 %v254, 1.0
    %v256 = vmul.f32 %v255, %v244
    %v257 = vand.u32 2147483647, %v244
    %vm258 = vcmp.lt.f32.partialorder %v257, 0.0004427343
    %v259 = vsel %vm258, %v256, %v253
    %v260 = vadd.f32 %v246, 1.0
    %v261 = vlog2.pop %v260
    %v262 = vmul.f32 %v261, 0.6931472
    %v263 = vmul.f32 -0.5, %v246
    %v264 = vadd.f32 %v263, 1.0
    %v265 = vmul.f32 %v264, %v246
    %v266 = vand.u32 2147483647, %v246
    %vm267 = vcmp.lt.f32.partialorder %v266, 0.0004427343
    %v268 = vsel %vm267, %v265, %v262
    %v269 = vadd.f32 %v248, 1.0
    %v270 = vlog2.pop %v269
    %v271 = vmul.f32 %v270, 0.6931472
    %v272 = vmul.f32 -0.5, %v248
    %v273 = vadd.f32 %v272, 1.0
    %v274 = vmul.f32 %v273, %v248
    %v275 = vand.u32 2147483647, %v248
    %vm276 = vcmp.lt.f32.partialorder %v275, 0.0004427343
    %v277 = vsel %vm276, %v274, %v271
    %v278 = vadd.f32 %v250, 1.0
    %v279 = vlog2.pop %v278
    %v280 = vmul.f32 %v279, 0.6931472
    %v281 = vmul.f32 -0.5, %v250
    %v282 = vadd.f32 %v281, 1.0
    %v283 = vmul.f32 %v282, %v250
    %v284 = vand.u32 2147483647, %v250
    %vm285 = vcmp.lt.f32.partialorder %v284, 0.0004427343
    %v286 = vsel %vm285, %v283, %v280
    %v287 = vmul.f32 %v259, 0.03125
    %v288 = vmul.f32 %v268, 0.03125
    %v289 = vmul.f32 %v277, 0.03125
    %v290 = vmul.f32 %v286, 0.03125
    %vm291 = vcmp.gt.f32.partialorder %v235, 20.0
    %vm292 = vcmp.gt.f32.partialorder %v236, 20.0
    %vm293 = vcmp.gt.f32.partialorder %v237, 20.0
    %vm294 = vcmp.gt.f32.partialorder %v238, 20.0
    %v295 = vsel %vm291, %v224, %v287
    %v296 = vsel %vm292, %v227, %v288
    %v297 = vsel %vm293, %v230, %v289
    %v298 = vsel %vm294, %v233, %v290
    %v299 = vld [vmem:[%s5] sm:$0xff]
    %v300 = vld [vmem:[%s5 + $0x8] sm:$0xff]
    %v301 = vld [vmem:[%s5 + $0x10] sm:$0xff]
    %v302 = vld [vmem:[%s5 + $0x18] sm:$0xff]
    %304 = vset.pattern.permute.xlu0 0
    %305 = vperm.xlu0 %304, %v299
    %v306 = vpop.permute.xlu0 %305
    %309 = vset.pattern.permute.xlu0 0
    %310 = vperm.xlu0 %309, %v300
    %v311 = vpop.permute.xlu0 %310
    %314 = vset.pattern.permute.xlu0 0
    %315 = vperm.xlu0 %314, %v301
    %v316 = vpop.permute.xlu0 %315
    %319 = vset.pattern.permute.xlu0 0
    %320 = vperm.xlu0 %319, %v302
    %v321 = vpop.permute.xlu0 %320
    %v323 = vmul.f32 %v295, %v306
    %v324 = vmul.f32 %v296, %v311
    %v325 = vmul.f32 %v297, %v316
    %v326 = vmul.f32 %v298, %v321
    %v327 = vadd.f32 %v323, %v324
    %v328 = vadd.f32 %v327, %v325
    %v329 = vadd.f32 %v328, %v326
    %v330 = vrot.slane %v329, 4
    %v331 = vadd.f32 %v329, %v330
    %v332 = vrot.slane %v331, 2
    %v333 = vadd.f32 %v331, %v332
    %v334 = vrot.slane %v333, 1
    %v335 = vadd.f32 %v333, %v334
    %v336 = vld [vmem:[#allocation2] sm:$0x1]
    %338 = vset.pattern.permute.xlu0 0
    %339 = vperm.xlu0 %338, %v336
    %v340 = vpop.permute.xlu0 %339
    %v342 = vperm.slane %v340, 0
    %v343 = vadd.f32 %v335, %v342
    %v344 = vsub.f32 0.0, %v343
    %v345 = vmul.f32 %v344, 1.442695
    %v346 = vpow.pop %v345
    %v347 = vadd.f32 %v346, 1.0
    %v348 = vrcp.pop %v347
    %v349 = vmul.f32 %v347, %v348
    %v350 = vsub.f32 1.0, %v349
    %v351 = vmul.f32 %v348, %v350
    %v352 = vadd.f32 %v348, %v351
    %vm353 = vweird.f32 %v347
    %vm354 = vweird.f32 %v348
    %vm355 = vmor %vm353, %vm354
    %v356 = vsel %vm355, %v348, %v352
    %v357 = vand.u32 2147483647, %v347
    %vm358 = vcmp.eq.f32.partialorder %v357, 8.507059e+37
    %v359 = vand.u32 %v347, 2147483648
    %v360 = vor.u32 1.1754944e-38, %v359
    %v361 = vsel %vm358, %v360, %v356
    %v362 = vmul.f32 1.0, %v361
    %363 = vst [vmem:[#allocation3] sm:$0x1] %v362
    // Predicated region
    $region30: #{tpu_custom_call.1} parent=1 // pred_check
      _
    $region31: #{tpu_custom_call.1} parent=1 // pred_check_branch
      %365 = sbr.rel (0) target = $region33
    $region32: #{tpu_custom_call.1} parent=1 // pred_region
      %367 = vsyncadd [#allocation4], 0
      %s369 = sshll.u32 [#allocation3], 4
      %s370 = int_to_ptr.vmem [resolvable:$true] %s369
      %s371 = sshll.u32 %s7, 4
      %s372 = int_to_ptr.hbm [resolvable:$true] %s371
      %374 = dma.vmem_to_hbm [thread:$0]  %s370, 16, %s372, [#allocation4]
    $region33: #{tpu_custom_call.1} parent=1 // pred_fallthru
      _
    // Predicated region
    $region34: #{tpu_custom_call.1} parent=1 // pred_check
      _
    $region35: #{tpu_custom_call.1} parent=1 // pred_check_branch
      %376 = sbr.rel (0) target = $region37
    $region36: #{tpu_custom_call.1} parent=1 // pred_region
      %378 = dma.done [#allocation4], 16
    $region37: #{tpu_custom_call.1} parent=1 // pred_fallthru
      _
    %379 = vsyncpa [#allocation4], 1

</llo_original>
